<compile_context>
chip_gen: v6e
topology: v6e:2x2x1
jax: 0.10.0
libtpu: 0.0.40
codegen_flags: <defaults>
</compile_context>

<pallas_src>
import jax
import jax.numpy as jnp
import numpy as np
from jax.experimental import pallas as pl
from jax.experimental.pallas import tpu as pltpu


# --------------------------------------------------------------------------
# Pallas kernel (one (batch, T-tile) block per grid step)
# --------------------------------------------------------------------------
def _make_level_kernel(no, na, nx, stride, anchor_wh, bbox_head, t_block,
                       with_raw):
    nano = na * no
    nx_f = float(nx)
    stride_f = float(stride)

    def kernel(x_ref, w_ref, b_ref, *out_refs):
        if with_raw:
            raw_ref, y_ref = out_refs
        else:
            (y_ref,) = out_refs

        x = x_ref[0]                              # (C, Tb)   bf16
        w = w_ref[...]                            # (nano, C) bf16
        # fused 1x1 conv over all anchors: (nano, C) @ (C, Tb), f32 accumulate
        conv = jnp.dot(w, x, preferred_element_type=jnp.float32) + b_ref[...]
        if with_raw:
            raw_ref[0] = conv                     # un-sigmoided head output

        s = jax.nn.sigmoid(conv)                  # (nano, Tb) f32
        y_ref[0] = s                              # lane-dense full store

        if bbox_head:
            # absolute spatial index of every lane in this T-tile
            t0 = (pl.program_id(1) * t_block).astype(jnp.float32)
            t_i = jax.lax.broadcasted_iota(jnp.int32, (2, t_block), 1)
            tf = t_i.astype(jnp.float32) + t0
            # exact float floor-division (robust for non power-of-two nx)
            gy = jnp.floor((tf + 0.5) / nx_f)
            gx = tf - gy * nx_f
            is_x = jax.lax.broadcasted_iota(jnp.int32, (2, t_block), 0) == 0
            grid_xy = jnp.where(is_x, gx, gy)     # row 0 -> gx, row 1 -> gy

            # decode only the 4 bbox rows per anchor (static small loop)
            for a in range(na):
                base = a * no
                aw, ah = anchor_wh[a]
                s_xy = s[base:base + 2, :]
                s_wh = s[base + 2:base + 4, :]
                y_ref[0, base:base + 2, :] = (
                    (s_xy * 2.0 - 0.5 + grid_xy) * stride_f)
                anch = jnp.where(is_x, jnp.float32(aw), jnp.float32(ah))
                y_ref[0, base + 2:base + 4, :] = (s_wh * 2.0) ** 2 * anch

    return kernel


def _choose_t_block(T, max_block=1024):
    # Whole feature map if it fits; otherwise a 128-multiple tile that divides T.
    if T <= max_block:
        return T
    for cand in (1024, 512, 256, 128):
        if cand <= max_block and T % cand == 0:
            return cand
    return T


def _detect_level(x_flat, w, b, *, no, na, nx, stride, anchor_wh, bbox_head,
                  with_raw=True):
    bs, C, T = x_flat.shape
    nano = na * no
    t_block = _choose_t_block(T)
    n_t = T // t_block

    kernel = _make_level_kernel(no, na, nx, stride, anchor_wh, bbox_head,
                                t_block, with_raw)

    y_shape = jax.ShapeDtypeStruct((bs, nano, T), jnp.float32)
    y_spec = pl.BlockSpec((1, nano, t_block), lambda bi, ti: (bi, 0, ti))
    if with_raw:
        out_shape = (y_shape, y_shape)   # (raw, y)
        out_specs = (y_spec, y_spec)
    else:
        out_shape = (y_shape,)
        out_specs = (y_spec,)

    outs = pl.pallas_call(
        kernel,
        out_shape=out_shape,
        grid=(bs, n_t),
        in_specs=[
            pl.BlockSpec((1, C, t_block), lambda bi, ti: (bi, 0, ti)),
            pl.BlockSpec((nano, C), lambda bi, ti: (0, 0)),
            pl.BlockSpec((nano, 1), lambda bi, ti: (0, 0)),
        ],
        out_specs=out_specs,
        compiler_params=pltpu.CompilerParams(
            dimension_semantics=("parallel", "parallel"),
            vmem_limit_bytes=32 * 1024 * 1024,
        ),
    )(x_flat, w, b)

    if with_raw:
        raw, y = outs
    else:
        (y,) = outs
        raw = None
    return raw, y


# --------------------------------------------------------------------------
# Module-equivalent wrapper
# --------------------------------------------------------------------------
class DetectPallas:
    def __init__(self, no=80, anchors=(), ch=(), bbox_head=False, key=None,
                 return_raw=True):
        self.bbox_head = bool(bbox_head)
        self.return_raw = bool(return_raw)
        self.no = no
        self.nl = len(anchors)
        self.na = len(anchors[0]) // 2
        stride = {3: [8, 16, 32], 2: [16, 32], 1: [32]}[self.nl]
        self.stride = np.asarray(stride, dtype=np.float32)
        a = np.asarray(anchors, dtype=np.float32).reshape(self.nl, -1, 2)
        self.anchors = a / self.stride.reshape(-1, 1, 1)   # (nl, na, 2), unused in fwd
        self.anchor_grid = a                               # raw anchor sizes

        # Deterministic synthetic parameter init (no checkpoint loading).
        if key is None:
            key = jax.random.PRNGKey(42)
        self._W_flat, self._B_flat = [], []   # f32 copies for the reference
        self.w, self.b = [], []               # kernel params: bf16 W, f32 bias col
        for c in ch:
            key, kw, kb = jax.random.split(key, 3)
            W = jax.random.normal(kw, (self.no * self.na, c), jnp.float32) * 0.05
            B = jax.random.normal(kb, (self.no * self.na,), jnp.float32) * 0.05
            self._W_flat.append(W)
            self._B_flat.append(B)
            self.w.append(W.astype(jnp.bfloat16))
            self.b.append(B.reshape(self.no * self.na, 1))

    def __call__(self, xs):
        z, raws = [], []
        for i in range(self.nl):
            x = xs[i]
            bs, C, ny, nx = x.shape
            T = ny * nx
            # Plain reshape (no NCHW->NHWC transpose); T lands on the lane axis.
            x_flat = x.reshape(bs, C, T).astype(jnp.bfloat16)
            anchor_wh = [(float(self.anchor_grid[i, a, 0]),
                          float(self.anchor_grid[i, a, 1]))
                         for a in range(self.na)]
            raw, y = _detect_level(
                x_flat, self.w[i], self.b[i],
                no=self.no, na=self.na, nx=nx,
                stride=float(self.stride[i]), anchor_wh=anchor_wh,
                bbox_head=self.bbox_head, with_raw=self.return_raw,
            )
            # (bs, na*no, T) -> PyTorch layouts via cheap XLA reshape/transpose.
            if self.return_raw:
                raws.append(raw.reshape(bs, self.na, self.no, ny, nx)
                               .transpose(0, 1, 3, 4, 2))
            z.append(y.reshape(bs, self.na, self.no, T)
                      .transpose(0, 1, 3, 2)
                      .reshape(bs, self.na * T, self.no))
        return jnp.concatenate(z, axis=1), (raws if self.return_raw else None)


# --------------------------------------------------------------------------
# Pure-JAX reference (mirrors the PyTorch forward, same bf16 matmul inputs)
# --------------------------------------------------------------------------
def _ref_forward(det: DetectPallas, xs):
    z, raws = [], []
    for i in range(det.nl):
        x = xs[i]
        bs, C, ny, nx = x.shape
        W = det._W_flat[i].astype(jnp.bfloat16)
        B = det._B_flat[i]
        xb = x.reshape(bs, C, ny * nx).astype(jnp.bfloat16)
        conv = jnp.einsum("oc,bct->bot", W, xb,
                          preferred_element_type=jnp.float32)
        conv = conv + B[None, :, None]
        xi = conv.reshape(bs, det.na, det.no, ny, nx).transpose(0, 1, 3, 4, 2)
        y = jax.nn.sigmoid(xi)
        if det.bbox_head:
            yv, xv = jnp.meshgrid(jnp.arange(ny), jnp.arange(nx), indexing="ij")
            grid = jnp.stack((xv, yv), 2).reshape(1, 1, ny, nx, 2).astype(jnp.float32)
            ag = jnp.asarray(det.anchor_grid[i]).reshape(1, det.na, 1, 1, 2)
            xy = (y[..., 0:2] * 2.0 - 0.5 + grid) * det.stride[i]
            wh = (y[..., 2:4] * 2.0) ** 2 * ag
            y = jnp.concatenate([xy, wh, y[..., 4:]], axis=-1)
        raws.append(xi)
        z.append(y.reshape(bs, -1, det.no))
    return jnp.concatenate(z, axis=1), raws


# --------------------------------------------------------------------------
if __name__ == "__main__":
    # Small synthetic config: 2 pyramid levels, 3 anchors, 8 outputs/anchor.
    anchors = ((10, 13, 16, 30, 33, 23), (30, 61, 62, 45, 59, 119))
    ch = (8, 16)
    no = 8
    det = DetectPallas(no=no, anchors=anchors, ch=ch, bbox_head=True)

    key = jax.random.PRNGKey(0)
    k0, k1 = jax.random.split(key)
    bs = 2
    xs = [
        jax.random.normal(k0, (bs, ch[0], 16, 16), jnp.float32),
        jax.random.normal(k1, (bs, ch[1], 8, 8), jnp.float32),
    ]

    z, raws = det(xs)
    jax.block_until_ready(z)
    for r in raws:
        jax.block_until_ready(r)

    # Verify against the pure-JAX reference of the PyTorch forward.
    z_ref, raws_ref = _ref_forward(det, xs)
    np.testing.assert_allclose(np.asarray(z), np.asarray(z_ref),
                               rtol=1e-3, atol=1e-3)
    for r, rr in zip(raws, raws_ref):
        np.testing.assert_allclose(np.asarray(r), np.asarray(rr),
                                   rtol=1e-3, atol=1e-3)

    print("KERNEL_OK")
</pallas_src>

<mosaic_0001>
module attributes {stable_mosaic.version = 11 : i64} {
  func.func @kernel(%arg0: i32, %arg1: i32, %arg2: memref<1x8x256xbf16, #tpu.memory_space<vmem>>, %arg3: memref<24x8xbf16, #tpu.memory_space<vmem>>, %arg4: memref<24x1xf32, #tpu.memory_space<vmem>>, %arg5: memref<1x24x256xf32, #tpu.memory_space<vmem>>, %arg6: memref<1x24x256xf32, #tpu.memory_space<vmem>>) attributes {dimension_semantics = [#tpu.dimension_semantics<parallel>, #tpu.dimension_semantics<parallel>], iteration_bounds = array<i64: 2, 1>, scalar_prefetch = 0 : i64, scratch_operands = 0 : i64, tpu.core_type = #tpu.core_type<tc>, window_params = [{transform_indices = @transform_0, window_bounds = array<i64: 1, 8, 256>}, {pipeline_mode = #tpu.pipeline_mode<synchronous>, transform_indices = @transform_1, window_bounds = array<i64: 24, 8>}, {pipeline_mode = #tpu.pipeline_mode<synchronous>, transform_indices = @transform_2, window_bounds = array<i64: 24, 1>}, {transform_indices = @transform_3, window_bounds = array<i64: 1, 24, 256>}, {transform_indices = @transform_4, window_bounds = array<i64: 1, 24, 256>}]} {
    %c0 = arith.constant 0 : index
    %c0_0 = arith.constant 0 : index
    %c0_1 = arith.constant 0 : index
    %0 = vector.load %arg2[%c0, %c0_0, %c0_1] : memref<1x8x256xbf16, #tpu.memory_space<vmem>>, vector<1x8x256xbf16>
    %1 = vector.shape_cast %0 : vector<1x8x256xbf16> to vector<8x256xbf16>
    %c0_2 = arith.constant 0 : index
    %c0_3 = arith.constant 0 : index
    %2 = vector.load %arg3[%c0_2, %c0_3] : memref<24x8xbf16, #tpu.memory_space<vmem>>, vector<24x8xbf16>
    %cst = arith.constant dense<0.000000e+00> : vector<24x256xf32>
    %3 = tpu.matmul %2, %1, %cst {dimension_numbers = #tpu.dot_dimension_numbers<[1], [0], [0], [1], [0, 0, 1, 1], [], []>} : vector<24x8xbf16>, vector<8x256xbf16>, vector<24x256xf32> -> vector<24x256xf32>
    %c0_4 = arith.constant 0 : index
    %c0_5 = arith.constant 0 : index
    %4 = vector.load %arg4[%c0_4, %c0_5] : memref<24x1xf32, #tpu.memory_space<vmem>>, vector<24x1xf32>
    %5 = vector.broadcast %4 : vector<24x1xf32> to vector<24x256xf32>
    %6 = arith.addf %3, %5 : vector<24x256xf32>
    %c0_6 = arith.constant 0 : index
    %c0_7 = arith.constant 0 : index
    %c0_8 = arith.constant 0 : index
    %7 = vector.load %arg5[%c0_6, %c0_7, %c0_8] : memref<1x24x256xf32, #tpu.memory_space<vmem>>, vector<1x24x256xf32>
    %8 = vector.shape_cast %7 : vector<1x24x256xf32> to vector<24x256xf32>
    %9 = vector.shape_cast %6 : vector<24x256xf32> to vector<1x24x256xf32>
    tpu.vector_store %arg5[%c0_6, %c0_7, %c0_8], %9 {strides = array<i32>} : memref<1x24x256xf32, #tpu.memory_space<vmem>>, vector<1x24x256xf32>,
    %10 = arith.negf %6 : vector<24x256xf32>
    %11 = math.exp %10 : vector<24x256xf32>
    %cst_9 = arith.constant 1.000000e+00 : f32
    %12 = vector.broadcast %cst_9 : f32 to vector<24x256xf32>
    %13 = arith.addf %12, %11 : vector<24x256xf32>
    %14 = arith.divf %12, %13 : vector<24x256xf32>
    %c0_10 = arith.constant 0 : index
    %c0_11 = arith.constant 0 : index
    %c0_12 = arith.constant 0 : index
    %15 = vector.load %arg6[%c0_10, %c0_11, %c0_12] : memref<1x24x256xf32, #tpu.memory_space<vmem>>, vector<1x24x256xf32>
    %16 = vector.shape_cast %15 : vector<1x24x256xf32> to vector<24x256xf32>
    %17 = vector.shape_cast %14 : vector<24x256xf32> to vector<1x24x256xf32>
    tpu.vector_store %arg6[%c0_10, %c0_11, %c0_12], %17 {strides = array<i32>} : memref<1x24x256xf32, #tpu.memory_space<vmem>>, vector<1x24x256xf32>,
    %c256_i32 = arith.constant 256 : i32
    %18 = arith.muli %arg1, %c256_i32 : i32
    %19 = arith.sitofp %18 : i32 to f32
    %20 = tpu.iota {dimensions = array<i32: 1>} : vector<2x256xi32>
    %21 = arith.sitofp %20 : vector<2x256xi32> to vector<2x256xf32>
    %22 = vector.broadcast %19 : f32 to vector<2x256xf32>
    %23 = arith.addf %21, %22 : vector<2x256xf32>
    %cst_13 = arith.constant 5.000000e-01 : f32
    %24 = vector.broadcast %cst_13 : f32 to vector<2x256xf32>
    %25 = arith.addf %23, %24 : vector<2x256xf32>
    %cst_14 = arith.constant 1.600000e+01 : f32
    %26 = vector.broadcast %cst_14 : f32 to vector<2x256xf32>
    %27 = arith.divf %25, %26 : vector<2x256xf32>
    %28 = math.floor %27 : vector<2x256xf32>
    %cst_15 = arith.constant 1.600000e+01 : f32
    %29 = vector.broadcast %cst_15 : f32 to vector<2x256xf32>
    %30 = arith.mulf %28, %29 : vector<2x256xf32>
    %31 = arith.subf %23, %30 : vector<2x256xf32>
    %32 = tpu.iota {dimensions = array<i32: 0>} : vector<2x256xi32>
    %c0_i32 = arith.constant 0 : i32
    %33 = vector.broadcast %c0_i32 : i32 to vector<2x256xi32>
    %34 = arith.cmpi eq, %32, %33 : vector<2x256xi32>
    %35 = arith.select %34, %31, %28 : vector<2x256xi1>, vector<2x256xf32>
    %36 = vector.extract_strided_slice %14 {offsets = [0, 0], sizes = [2, 256], strides = [1, 1]} : vector<24x256xf32> to vector<2x256xf32>
    %37 = vector.extract_strided_slice %14 {offsets = [2, 0], sizes = [2, 256], strides = [1, 1]} : vector<24x256xf32> to vector<2x256xf32>
    %cst_16 = arith.constant 2.000000e+00 : f32
    %38 = vector.broadcast %cst_16 : f32 to vector<2x256xf32>
    %39 = arith.mulf %36, %38 : vector<2x256xf32>
    %cst_17 = arith.constant 5.000000e-01 : f32
    %40 = vector.broadcast %cst_17 : f32 to vector<2x256xf32>
    %41 = arith.subf %39, %40 : vector<2x256xf32>
    %42 = arith.addf %41, %35 : vector<2x256xf32>
    %cst_18 = arith.constant 1.600000e+01 : f32
    %43 = vector.broadcast %cst_18 : f32 to vector<2x256xf32>
    %44 = arith.mulf %42, %43 : vector<2x256xf32>
    %c0_19 = arith.constant 0 : index
    %c0_20 = arith.constant 0 : index
    %c0_21 = arith.constant 0 : index
    %45 = vector.load %arg6[%c0_19, %c0_20, %c0_21] : memref<1x24x256xf32, #tpu.memory_space<vmem>>, vector<1x2x256xf32>
    %46 = vector.shape_cast %45 : vector<1x2x256xf32> to vector<2x256xf32>
    %47 = vector.shape_cast %44 : vector<2x256xf32> to vector<1x2x256xf32>
    tpu.vector_store %arg6[%c0_19, %c0_20, %c0_21], %47 {strides = array<i32>} : memref<1x24x256xf32, #tpu.memory_space<vmem>>, vector<1x2x256xf32>,
    %cst_22 = arith.constant 1.000000e+01 : f32
    %cst_23 = arith.constant 1.300000e+01 : f32
    %48 = vector.broadcast %cst_22 : f32 to vector<2x256xf32>
    %49 = vector.broadcast %cst_23 : f32 to vector<2x256xf32>
    %50 = arith.select %34, %48, %49 : vector<2x256xi1>, vector<2x256xf32>
    %cst_24 = arith.constant 2.000000e+00 : f32
    %51 = vector.broadcast %cst_24 : f32 to vector<2x256xf32>
    %52 = arith.mulf %37, %51 : vector<2x256xf32>
    %53 = arith.mulf %52, %52 : vector<2x256xf32>
    %54 = arith.mulf %53, %50 : vector<2x256xf32>
    %c0_25 = arith.constant 0 : index
    %c2 = arith.constant 2 : index
    %c0_26 = arith.constant 0 : index
    %55 = vector.load %arg6[%c0_25, %c2, %c0_26] : memref<1x24x256xf32, #tpu.memory_space<vmem>>, vector<1x2x256xf32>
    %56 = vector.shape_cast %55 : vector<1x2x256xf32> to vector<2x256xf32>
    %57 = vector.shape_cast %54 : vector<2x256xf32> to vector<1x2x256xf32>
    tpu.vector_store %arg6[%c0_25, %c2, %c0_26], %57 {strides = array<i32>} : memref<1x24x256xf32, #tpu.memory_space<vmem>>, vector<1x2x256xf32>,
    %58 = vector.extract_strided_slice %14 {offsets = [8, 0], sizes = [2, 256], strides = [1, 1]} : vector<24x256xf32> to vector<2x256xf32>
    %59 = vector.extract_strided_slice %14 {offsets = [10, 0], sizes = [2, 256], strides = [1, 1]} : vector<24x256xf32> to vector<2x256xf32>
    %cst_27 = arith.constant 2.000000e+00 : f32
    %60 = vector.broadcast %cst_27 : f32 to vector<2x256xf32>
    %61 = arith.mulf %58, %60 : vector<2x256xf32>
    %cst_28 = arith.constant 5.000000e-01 : f32
    %62 = vector.broadcast %cst_28 : f32 to vector<2x256xf32>
    %63 = arith.subf %61, %62 : vector<2x256xf32>
    %64 = arith.addf %63, %35 : vector<2x256xf32>
    %cst_29 = arith.constant 1.600000e+01 : f32
    %65 = vector.broadcast %cst_29 : f32 to vector<2x256xf32>
    %66 = arith.mulf %64, %65 : vector<2x256xf32>
    %c0_30 = arith.constant 0 : index
    %c8 = arith.constant 8 : index
    %c0_31 = arith.constant 0 : index
    %67 = vector.load %arg6[%c0_30, %c8, %c0_31] : memref<1x24x256xf32, #tpu.memory_space<vmem>>, vector<1x2x256xf32>
    %68 = vector.shape_cast %67 : vector<1x2x256xf32> to vector<2x256xf32>
    %69 = vector.shape_cast %66 : vector<2x256xf32> to vector<1x2x256xf32>
    tpu.vector_store %arg6[%c0_30, %c8, %c0_31], %69 {strides = array<i32>} : memref<1x24x256xf32, #tpu.memory_space<vmem>>, vector<1x2x256xf32>,
    %cst_32 = arith.constant 1.600000e+01 : f32
    %cst_33 = arith.constant 3.000000e+01 : f32
    %70 = vector.broadcast %cst_32 : f32 to vector<2x256xf32>
    %71 = vector.broadcast %cst_33 : f32 to vector<2x256xf32>
    %72 = arith.select %34, %70, %71 : vector<2x256xi1>, vector<2x256xf32>
    %cst_34 = arith.constant 2.000000e+00 : f32
    %73 = vector.broadcast %cst_34 : f32 to vector<2x256xf32>
    %74 = arith.mulf %59, %73 : vector<2x256xf32>
    %75 = arith.mulf %74, %74 : vector<2x256xf32>
    %76 = arith.mulf %75, %72 : vector<2x256xf32>
    %c0_35 = arith.constant 0 : index
    %c10 = arith.constant 10 : index
    %c0_36 = arith.constant 0 : index
    %77 = vector.load %arg6[%c0_35, %c10, %c0_36] : memref<1x24x256xf32, #tpu.memory_space<vmem>>, vector<1x2x256xf32>
    %78 = vector.shape_cast %77 : vector<1x2x256xf32> to vector<2x256xf32>
    %79 = vector.shape_cast %76 : vector<2x256xf32> to vector<1x2x256xf32>
    tpu.vector_store %arg6[%c0_35, %c10, %c0_36], %79 {strides = array<i32>} : memref<1x24x256xf32, #tpu.memory_space<vmem>>, vector<1x2x256xf32>,
    %80 = vector.extract_strided_slice %14 {offsets = [16, 0], sizes = [2, 256], strides = [1, 1]} : vector<24x256xf32> to vector<2x256xf32>
    %81 = vector.extract_strided_slice %14 {offsets = [18, 0], sizes = [2, 256], strides = [1, 1]} : vector<24x256xf32> to vector<2x256xf32>
    %cst_37 = arith.constant 2.000000e+00 : f32
    %82 = vector.broadcast %cst_37 : f32 to vector<2x256xf32>
    %83 = arith.mulf %80, %82 : vector<2x256xf32>
    %cst_38 = arith.constant 5.000000e-01 : f32
    %84 = vector.broadcast %cst_38 : f32 to vector<2x256xf32>
    %85 = arith.subf %83, %84 : vector<2x256xf32>
    %86 = arith.addf %85, %35 : vector<2x256xf32>
    %cst_39 = arith.constant 1.600000e+01 : f32
    %87 = vector.broadcast %cst_39 : f32 to vector<2x256xf32>
    %88 = arith.mulf %86, %87 : vector<2x256xf32>
    %c0_40 = arith.constant 0 : index
    %c16 = arith.constant 16 : index
    %c0_41 = arith.constant 0 : index
    %89 = vector.load %arg6[%c0_40, %c16, %c0_41] : memref<1x24x256xf32, #tpu.memory_space<vmem>>, vector<1x2x256xf32>
    %90 = vector.shape_cast %89 : vector<1x2x256xf32> to vector<2x256xf32>
    %91 = vector.shape_cast %88 : vector<2x256xf32> to vector<1x2x256xf32>
    tpu.vector_store %arg6[%c0_40, %c16, %c0_41], %91 {strides = array<i32>} : memref<1x24x256xf32, #tpu.memory_space<vmem>>, vector<1x2x256xf32>,
    %cst_42 = arith.constant 3.300000e+01 : f32
    %cst_43 = arith.constant 2.300000e+01 : f32
    %92 = vector.broadcast %cst_42 : f32 to vector<2x256xf32>
    %93 = vector.broadcast %cst_43 : f32 to vector<2x256xf32>
    %94 = arith.select %34, %92, %93 : vector<2x256xi1>, vector<2x256xf32>
    %cst_44 = arith.constant 2.000000e+00 : f32
    %95 = vector.broadcast %cst_44 : f32 to vector<2x256xf32>
    %96 = arith.mulf %81, %95 : vector<2x256xf32>
    %97 = arith.mulf %96, %96 : vector<2x256xf32>
    %98 = arith.mulf %97, %94 : vector<2x256xf32>
    %c0_45 = arith.constant 0 : index
    %c18 = arith.constant 18 : index
    %c0_46 = arith.constant 0 : index
    %99 = vector.load %arg6[%c0_45, %c18, %c0_46] : memref<1x24x256xf32, #tpu.memory_space<vmem>>, vector<1x2x256xf32>
    %100 = vector.shape_cast %99 : vector<1x2x256xf32> to vector<2x256xf32>
    %101 = vector.shape_cast %98 : vector<2x256xf32> to vector<1x2x256xf32>
    tpu.vector_store %arg6[%c0_45, %c18, %c0_46], %101 {strides = array<i32>} : memref<1x24x256xf32, #tpu.memory_space<vmem>>, vector<1x2x256xf32>,
    return
  }
  func.func @transform_0(%arg0: i32, %arg1: i32) -> (i32, i32, i32) {
    %c0_i32 = arith.constant 0 : i32
    %c0_i32_0 = arith.constant 0 : i32
    return %arg0, %c0_i32, %arg1 : i32, i32, i32
  }
  func.func @transform_1(%arg0: i32, %arg1: i32) -> (i32, i32) {
    %c0_i32 = arith.constant 0 : i32
    %c0_i32_0 = arith.constant 0 : i32
    %c0_i32_1 = arith.constant 0 : i32
    return %c0_i32, %c0_i32_0 : i32, i32
  }
  func.func @transform_2(%arg0: i32, %arg1: i32) -> (i32, i32) {
    %c0_i32 = arith.constant 0 : i32
    %c0_i32_0 = arith.constant 0 : i32
    %c0_i32_1 = arith.constant 0 : i32
    return %c0_i32, %c0_i32_0 : i32, i32
  }
  func.func @transform_3(%arg0: i32, %arg1: i32) -> (i32, i32, i32) {
    %c0_i32 = arith.constant 0 : i32
    %c0_i32_0 = arith.constant 0 : i32
    return %arg0, %c0_i32, %arg1 : i32, i32, i32
  }
  func.func @transform_4(%arg0: i32, %arg1: i32) -> (i32, i32, i32) {
    %c0_i32 = arith.constant 0 : i32
    %c0_i32_0 = arith.constant 0 : i32
    return %arg0, %c0_i32, %arg1 : i32, i32, i32
  }
}

</mosaic_0001>

<llo_original>
// kernel: tpu_custom_call.1
$region0: #{tpu_custom_call.1}
  #allocation0 [shape = 'u32[]', space=smem, size = 0x4, offset = 0x4, fixed_abs, tag = 'smem constant byte address 0x4 - core index']
  #allocation1 [shape = 'u32[144,128]{1,0:T(1,128)}', space=vmem, size = 0x12000, scoped, tag = 'internal scratch']
  %s0 = inlined_call_operand.vmem [shape: bf16[2,8,256], index: 0, kind: input, shape index: {}]
  %s1 = inlined_call_operand.vmem [shape: bf16[24,8], index: 1, kind: input, shape index: {}]
  %s2 = inlined_call_operand.vmem [shape: f32[24,1], index: 2, kind: input, shape index: {}]
  %s3 = inlined_call_operand.hbm [shape: f32[2,24,256], index: 3, kind: output, shape index: {0}]
  %s4 = inlined_call_operand.hbm [shape: f32[2,24,256], index: 4, kind: output, shape index: {1}]
  %5 = xla_tuple %s3, %s4
  %s6 = sld [smem:[#allocation0]]
  $region53: #{tpu_custom_call.1} parent=0
    _
  %s8 = ssub.s32 1, %s6
  %s9 = scalar_select 0, %s8, %s6
  $region1: #{tpu_custom_call.1} parent=0
    #allocation2 [shape = 'u8[49152]{0}', space=vmem, size = 0xc000, scoped, tag = 'output window, operand 0']
    #allocation3 [shape = 's32[2]{0}', space=sflag, size = 0x8, scoped, tag = 'scoped memory for tpu_custom_call.1']
    #allocation4 [shape = 'u8[49152]{0}', space=vmem, size = 0xc000, scoped, tag = 'output window, operand 1']
    #allocation5 [shape = 's32[2]{0}', space=sflag, size = 0x8, scoped, tag = 'scoped memory for tpu_custom_call.1']
    %10 = vsyncpa [#allocation3], 0
    %s11 = scalar_lea.sflag [#allocation3], 1
    %12 = vsyncpa %s11, 0
    %13 = vsyncpa [#allocation5], 0
    %s14 = scalar_lea.sflag [#allocation5], 1
    %15 = vsyncpa %s14, 0
    loop: start=0, step=1, limit=4
    $region2: #{tpu_custom_call.1} parent=1 // loop_pre_header
      _
    $region3: #{tpu_custom_call.1} parent=1 // loop_header
      %s17 = sphi 0, %s21
      %p18 = scmp.ge.s32.totalorder %s17, 4
      %s24 = sphi 0, %s36
      %s25 = sphi 0, %s32
      %s26 = sphi 0, %s24
      %s27 = sphi 0, %s25
      %s28 = sphi 0, %s26
      %s29 = sphi 0, %s27
      %s41 = sphi 0, %s43
      %s44 = sphi 0, %s41
      %s45 = sphi 0, %s44
      %s61 = sphi 0, %s45
      %s65 = sphi 0, %s65
      %s67 = sphi 0, %s65
      %s68 = sphi 0, %s67
      %s82 = sphi 0, %s68
      %s86 = sphi 0, %s86
      %s88 = sphi 0, %s86
      %s89 = sphi 0, %s88
      %s103 = sphi 0, %s89
      %s111 = sphi 0, %s113
      %s114 = sphi 0, %s111
      %s115 = sphi 0, %s114
      %s131 = sphi 0, %s115
      %s139 = sphi 0, %s141
      %s142 = sphi 0, %s139
      %s143 = sphi 0, %s142
      %s159 = sphi 0, %s143
    $region4: #{tpu_custom_call.1} parent=1 // loop_header_branch
      %20 = sbr.rel (%p18) target = $region8
    $region5: #{tpu_custom_call.1} parent=1 // loop_body
      %s22 = ssub.s32 %s17, 1
      %s23 = ssub.s32 %s17, 2
      %s30 = sadd.s32 1, %s25
      %p31 = scmp.ge.s32.totalorder %s30, 1
      %s32 = scalar_select %p31, 0, %s30
      %s33 = sadd.s32 1, %s24
      %s34 = scalar_select %p31, %s33, %s24
      %p35 = scmp.ge.s32.totalorder %s34, 2
      %s36 = scalar_select %p35, 0, %s34
      %s37 = ssub.s32 %s24, %s36
      %s38 = ssub.s32 %s25, %s32
      %s39 = sor.u32 %s37, %s38
      %p40 = scmp.eq.s32.totalorder %s39, 0
      %s42 = sadd.s32 %s41, 1
      %s43 = scalar_select %p40, %s41, %s42
      %p46 = pneg %p40
      %p47 = scmp.eq.s32.totalorder %s17, 1
      %p48 = por %p46, %p47
      %p49 = scmp.ne.s32.totalorder %s41, %s44
      %p50 = scmp.eq.s32.totalorder %s17, 0
      %p51 = por %p49, %p50
      %p52 = scmp.ne.s32.totalorder %s41, %s44
      %p53 = scmp.eq.s32.totalorder %s22, 1
      %p54 = por %p52, %p53
      %p55 = scmp.ne.s32.totalorder %s44, %s45
      %p56 = scmp.eq.s32.totalorder %s22, 0
      %p57 = por %p55, %p56
      %p58 = scmp.ne.s32.totalorder %s44, %s45
      %p59 = scmp.eq.s32.totalorder %s23, 1
      %p60 = por %p58, %p59
      %p62 = scmp.ne.s32.totalorder %s45, %s61
      %p63 = scmp.eq.s32.totalorder %s23, 0
      %p64 = por %p62, %p63
      %s66 = sadd.s32 %s65, 1
      %p69 = scmp.eq.s32.totalorder %s17, 1
      %p70 = scmp.ne.s32.totalorder %s65, %s67
      %p71 = scmp.eq.s32.totalorder %s17, 0
      %p72 = por %p70, %p71
      %p73 = scmp.ne.s32.totalorder %s65, %s67
      %p74 = scmp.eq.s32.totalorder %s22, 1
      %p75 = por %p73, %p74
      %p76 = scmp.ne.s32.totalorder %s67, %s68
      %p77 = scmp.eq.s32.totalorder %s22, 0
      %p78 = por %p76, %p77
      %p79 = scmp.ne.s32.totalorder %s67, %s68
      %p80 = scmp.eq.s32.totalorder %s23, 1
      %p81 = por %p79, %p80
      %p83 = scmp.ne.s32.totalorder %s68, %s82
      %p84 = scmp.eq.s32.totalorder %s23, 0
      %p85 = por %p83, %p84
      %s87 = sadd.s32 %s86, 1
      %p90 = scmp.eq.s32.totalorder %s17, 1
      %p91 = scmp.ne.s32.totalorder %s86, %s88
      %p92 = scmp.eq.s32.totalorder %s17, 0
      %p93 = por %p91, %p92
      %p94 = scmp.ne.s32.totalorder %s86, %s88
      %p95 = scmp.eq.s32.totalorder %s22, 1
      %p96 = por %p94, %p95
      %p97 = scmp.ne.s32.totalorder %s88, %s89
      %p98 = scmp.eq.s32.totalorder %s22, 0
      %p99 = por %p97, %p98
      %p100 = scmp.ne.s32.totalorder %s88, %s89
      %p101 = scmp.eq.s32.totalorder %s23, 1
      %p102 = por %p100, %p101
      %p104 = scmp.ne.s32.totalorder %s89, %s103
      %p105 = scmp.eq.s32.totalorder %s23, 0
      %p106 = por %p104, %p105
      %s107 = ssub.s32 %s24, %s36
      %s108 = ssub.s32 %s25, %s32
      %s109 = sor.u32 %s107, %s108
      %p110 = scmp.eq.s32.totalorder %s109, 0
      %s112 = sadd.s32 %s111, 1
      %s113 = scalar_select %p110, %s111, %s112
      %p116 = pneg %p110
      %p117 = scmp.eq.s32.totalorder %s17, 1
      %p118 = por %p116, %p117
      %p119 = scmp.ne.s32.totalorder %s111, %s114
      %p120 = scmp.eq.s32.totalorder %s17, 0
      %p121 = por %p119, %p120
      %p122 = scmp.ne.s32.totalorder %s111, %s114
      %p123 = scmp.eq.s32.totalorder %s22, 1
      %p124 = por %p122, %p123
      %p125 = scmp.ne.s32.totalorder %s114, %s115
      %p126 = scmp.eq.s32.totalorder %s22, 0
      %p127 = por %p125, %p126
      %p128 = scmp.ne.s32.totalorder %s114, %s115
      %p129 = scmp.eq.s32.totalorder %s23, 1
      %p130 = por %p128, %p129
      %p132 = scmp.ne.s32.totalorder %s115, %s131
      %p133 = scmp.eq.s32.totalorder %s23, 0
      %p134 = por %p132, %p133
      %s135 = ssub.s32 %s24, %s36
      %s136 = ssub.s32 %s25, %s32
      %s137 = sor.u32 %s135, %s136
      %p138 = scmp.eq.s32.totalorder %s137, 0
      %s140 = sadd.s32 %s139, 1
      %s141 = scalar_select %p138, %s139, %s140
      %p144 = pneg %p138
      %p145 = scmp.eq.s32.totalorder %s17, 1
      %p146 = por %p144, %p145
      %p147 = scmp.ne.s32.totalorder %s139, %s142
      %p148 = scmp.eq.s32.totalorder %s17, 0
      %p149 = por %p147, %p148
      %p150 = scmp.ne.s32.totalorder %s139, %s142
      %p151 = scmp.eq.s32.totalorder %s22, 1
      %p152 = por %p150, %p151
      %p153 = scmp.ne.s32.totalorder %s142, %s143
      %p154 = scmp.eq.s32.totalorder %s22, 0
      %p155 = por %p153, %p154
      %p156 = scmp.ne.s32.totalorder %s142, %s143
      %p157 = scmp.eq.s32.totalorder %s23, 1
      %p158 = por %p156, %p157
      %p160 = scmp.ne.s32.totalorder %s143, %s159
      %p161 = scmp.eq.s32.totalorder %s23, 0
      %p162 = por %p160, %p161
      %p163 = scmp.le.s32.totalorder 1, %s17
      %p164 = scmp.lt.s32.totalorder %s17, 3
      %p165 = pnand %p163, %p164
      %p166 = pneg %p165
      // Predicated region
      $region9: #{tpu_custom_call.1} parent=5 // pred_check
        _
      $region10: #{tpu_custom_call.1} parent=5 // pred_check_branch
        %168 = sbr.rel (%p165) target = $region12
      $region11: #{tpu_custom_call.1} parent=5 // pred_region
        %s169 = ssub.s32 %s17, 1
        // Predicated region
        $region13: #{tpu_custom_call.1} parent=11 // pred_check
          %p170 = pneg %p78
        $region14: #{tpu_custom_call.1} parent=11 // pred_check_branch
          %172 = sbr.rel (%p170) target = $region16
        $region15: #{tpu_custom_call.1} parent=11 // pred_region
          _
        $region16: #{tpu_custom_call.1} parent=11 // pred_fallthru
          _
        // Predicated region
        $region17: #{tpu_custom_call.1} parent=11 // pred_check
          %p173 = pneg %p99
        $region18: #{tpu_custom_call.1} parent=11 // pred_check_branch
          %175 = sbr.rel (%p173) target = $region20
        $region19: #{tpu_custom_call.1} parent=11 // pred_region
          _
        $region20: #{tpu_custom_call.1} parent=11 // pred_fallthru
          _
      $region12: #{tpu_custom_call.1} parent=5 // pred_fallthru
        _
      %p176 = scmp.lt.s32.totalorder %s17, 2
      // Predicated region
      $region21: #{tpu_custom_call.1} parent=5 // pred_check
        %p177 = pneg %p176
      $region22: #{tpu_custom_call.1} parent=5 // pred_check_branch
        %179 = sbr.rel (%p177) target = $region24
      $region23: #{tpu_custom_call.1} parent=5 // pred_region
        // Predicated region
        $region25: #{tpu_custom_call.1} parent=23 // pred_check
          %p180 = pneg %p51
        $region26: #{tpu_custom_call.1} parent=23 // pred_check_branch
          %182 = sbr.rel (%p180) target = $region28
        $region27: #{tpu_custom_call.1} parent=23 // pred_region
          %s183 = smul.u32 2, %s25
          %p184 = scmp.lt.s32.totalorder %s24, 1
          %s185 = scalar_select %p184, %s24, 1
          %p186 = scmp.lt.s32.totalorder %s183, 1
          %s187 = scalar_select %p186, %s183, 1
          %s188 = smul.addr %s185, 2
          %s189 = sadd.s32 %s187, %s188
          %s190 = smul.addr %s189, 4
          %s191 = scalar_lea.vmem %s0, %s190
          %s192 = smul.u32 2, %s25
        $region28: #{tpu_custom_call.1} parent=23 // pred_fallthru
          _
      $region24: #{tpu_custom_call.1} parent=5 // pred_fallthru
        _
      %p193 = scmp.le.s32.totalorder 1, %s17
      %p194 = scmp.lt.s32.totalorder %s17, 3
      %p195 = pnand %p193, %p194
      %p196 = pneg %p195
      // Predicated region
      $region29: #{tpu_custom_call.1} parent=5 // pred_check
        _
      $region30: #{tpu_custom_call.1} parent=5 // pred_check_branch
        %198 = sbr.rel (%p195) target = $region32
      $region31: #{tpu_custom_call.1} parent=5 // pred_region
        %s199 = ssub.s32 %s17, 1
        %s200 = smul.u32 2, %s27
        %p201 = scmp.lt.s32.totalorder %s26, 1
        %s202 = scalar_select %p201, %s26, 1
        %p203 = scmp.lt.s32.totalorder %s200, 1
        %s204 = scalar_select %p203, %s200, 1
        %s205 = smul.addr %s202, 2
        %s206 = sadd.s32 %s204, %s205
        %s207 = smul.addr %s206, 4
        %s208 = scalar_lea.vmem %s0, %s207
        %p209 = pneg %p57
        %p210 = pneg %p54
        %p211 = pneg %p78
        %p212 = pneg %p75
        %p213 = pneg %p99
        %p214 = pneg %p96
        %p215 = pneg %p127
        %p216 = pneg %p124
        %s217 = sand.u32 %s114, 1
        %s218 = scalar_lea.sflag [#allocation3], %s217
        %s219 = sand.u32 %s114, 1
        %s220 = smul.addr %s219, 48
        %s221 = scalar_lea.vmem [#allocation2], %s220
        %p222 = pneg %p155
        %p223 = pneg %p152
        %s224 = sand.u32 %s142, 1
        %s225 = scalar_lea.sflag [#allocation5], %s224
        %s226 = sand.u32 %s142, 1
        %s227 = smul.addr %s226, 48
        %s228 = scalar_lea.vmem [#allocation4], %s227
        %s229 = smul.u32 2, %s27
        %p230 = scmp.lt.s32.totalorder %s26, 1
        %s231 = scalar_select %p230, %s26, 1
        %p232 = scmp.lt.s32.totalorder %s229, 1
        %s233 = scalar_select %p232, %s229, 1
        %s234 = smul.addr %s231, 2
        %s235 = sadd.s32 %s233, %s234
        %s236 = smul.addr %s235, 4
        %s237 = scalar_lea.vmem %s0, %s236
        %s238 = smul.u32 2, %s27
        %s239 = smul.u32 2, %s27
        %s240 = smul.u32 2, %s27
        %v242 = vld [vmem:[%s237] sm:$0xff]
        %v243 = vld [vmem:[%s1] sm:$0xf]
        %v244 = vld [vmem:[%s1 + $0x4] sm:$0xf]
        %v245 = vld [vmem:[%s1 + $0x8] sm:$0xf]
        %v246 = vld [vmem:[%s2] sm:$0xff]
        %v247 = vld [vmem:[%s2 + $0x8] sm:$0xff]
        %v248 = vld [vmem:[%s2 + $0x10] sm:$0xff]
        %250 = vset.pattern.permute.xlu0 0
        %251 = vperm.xlu0 %250, %v246
        %v252 = vpop.permute.xlu0 %251
        %255 = vset.pattern.permute.xlu0 0
        %256 = vperm.xlu0 %255, %v247
        %v257 = vpop.permute.xlu0 %256
        %260 = vset.pattern.permute.xlu0 0
        %261 = vperm.xlu0 %260, %v248
        %v262 = vpop.permute.xlu0 %261
        %v267 = vunpack.c.l.b16 %v243
        %v268 = vunpack.c.l.b16 %v244
        %v269 = vunpack.c.l.b16 %v245
        %v270 = vpack.c.b16 %v268, %v267
        %v271 = vpack.c.b16 %v269, %v269
        %v273 = vunpack.c.l.b16 %v242
        %v274 = vunpack.c.h.b16 %v242
        %v275 = vpack.c.b16 %v273, %v273
        %v276 = vpack.c.b16 %v274, %v274
        %vm277 = vcmask 64512
        %v279 = vsel %vm277, %v270, 0
        %v282 = vsel %vm277, %v271, 0
        %vm284 = vcmask 1043456
        %v286 = vsel %vm284, %v275, 0
        %v289 = vsel %vm284, %v276, 0
        %291 = vmatprep.subr.bf16.mxu0 0
        %292 = vmatpush1.bf16.msra.mxu0 0
        %293 = vmatprep.subr.bf16.mxu0 0
        %294 = vmatpush1.bf16.msra.mxu0 0
        %295 = vmatprep.subr.bf16.mxu0 0
        %296 = vmatpush1.bf16.msra.mxu0 0
        %297 = vmatprep.subr.bf16.mxu0 0
        %298 = vmatpush1.bf16.msra.mxu0 0
        %299 = vmatprep.subr.bf16.mxu0 0
        %300 = vmatpush1.bf16.msra.mxu0 0
        %301 = vmatprep.subr.bf16.mxu0 0
        %302 = vmatpush1.bf16.msra.mxu0 0
        %303 = vmatprep.subr.bf16.mxu0 0
        %304 = vmatpush1.bf16.msra.mxu0 0
        %305 = vmatprep.subr.bf16.mxu0 %v289
        %306 = vmatpush1.bf16.msra.mxu0 %v286
        %307 = vmatprep.subr.bf16.mxu0 0
        %308 = vmatpush2.bf16.msra.mxu0 0
        %309 = vmatprep.subr.bf16.mxu0 0
        %310 = vmatpush2.bf16.msra.mxu0 0
        %311 = vmatprep.subr.bf16.mxu0 0
        %312 = vmatpush2.bf16.msra.mxu0 0
        %313 = vmatprep.subr.bf16.mxu0 0
        %314 = vmatpush2.bf16.msra.mxu0 0
        %315 = vmatprep.subr.bf16.mxu0 0
        %316 = vmatpush2.bf16.msra.mxu0 0
        %317 = vmatprep.subr.bf16.mxu0 0
        %318 = vmatpush2.bf16.msra.mxu0 0
        %319 = vmatprep.subr.bf16.mxu0 0
        %320 = vmatpush2.bf16.msra.mxu0 0
        %321 = vmatprep.subr.bf16.mxu0 0
        %322 = vmatpush2.bf16.msra.mxu0 0
        %323 = vmatprep.mubr.bf16.mxu0 0
        %324 = vmatmul.mubr.bf16.gmra.mxu0 %v279
        %v325 = vpop.f32.mrf.mxu0
        %v326 = vadd.f32 %v252, %v325
        %v327 = vpop.f32.mrf.mxu0
        %v328 = vadd.f32 %v252, %v327
        %v329 = vpop.f32.mrf.mxu0
        %v330 = vadd.f32 %v257, %v329
        %v331 = vpop.f32.mrf.mxu0
        %v332 = vadd.f32 %v257, %v331
        %333 = vmatprep.mubr.bf16.mxu0 0
        %334 = vmatmul.mubr.bf16.gmra.mxu0 %v282
        %v335 = vpop.f32.mrf.mxu0
        %v336 = vadd.f32 %v262, %v335
        %v337 = vpop.f32.mrf.mxu0
        %v338 = vadd.f32 %v262, %v337
        %v339 = vpop.f32.mrf.mxu0
        %v340 = vpop.f32.mrf.mxu0
        %341 = vdwg.mxu0
        %342 = vst [vmem:[%s221] sm:$0xff] %v326
        %343 = vst [vmem:[%s221 + $0x8] sm:$0xff] %v328
        %344 = vst [vmem:[%s221 + $0x10] sm:$0xff] %v330
        %345 = vst [vmem:[%s221 + $0x18] sm:$0xff] %v332
        %346 = vst [vmem:[%s221 + $0x20] sm:$0xff] %v336
        %347 = vst [vmem:[%s221 + $0x28] sm:$0xff] %v338
        %v348 = vxor.u32 %v326, 2147483648
        %v349 = vxor.u32 %v328, 2147483648
        %v350 = vxor.u32 %v330, 2147483648
        %v351 = vxor.u32 %v332, 2147483648
        %v352 = vxor.u32 %v336, 2147483648
        %v353 = vxor.u32 %v338, 2147483648
        %v354 = vmul.f32 %v348, 1.442695
        %v355 = vpow.pop %v354
        %v356 = vmul.f32 %v349, 1.442695
        %v357 = vpow.pop %v356
        %v358 = vmul.f32 %v350, 1.442695
        %v359 = vpow.pop %v358
        %v360 = vmul.f32 %v351, 1.442695
        %v361 = vpow.pop %v360
        %v362 = vmul.f32 %v352, 1.442695
        %v363 = vpow.pop %v362
        %v364 = vmul.f32 %v353, 1.442695
        %v365 = vpow.pop %v364
        %v366 = vadd.f32 %v355, 1.0
        %v367 = vadd.f32 %v357, 1.0
        %v368 = vadd.f32 %v359, 1.0
        %v369 = vadd.f32 %v361, 1.0
        %v370 = vadd.f32 %v363, 1.0
        %v371 = vadd.f32 %v365, 1.0
        %v372 = vrcp.pop %v366
        %v373 = vmul.f32 1.0, %v372
        %v374 = vrcp.pop %v367
        %v375 = vmul.f32 1.0, %v374
        %v376 = vrcp.pop %v368
        %v377 = vmul.f32 1.0, %v376
        %v378 = vrcp.pop %v369
        %v379 = vmul.f32 1.0, %v378
        %v380 = vrcp.pop %v370
        %v381 = vmul.f32 1.0, %v380
        %v382 = vrcp.pop %v371
        %v383 = vmul.f32 1.0, %v382
        %384 = vst [vmem:[%s228] sm:$0xff] %v373
        %385 = vst [vmem:[%s228 + $0x8] sm:$0xff] %v375
        %386 = vst [vmem:[%s228 + $0x10] sm:$0xff] %v377
        %387 = vst [vmem:[%s228 + $0x18] sm:$0xff] %v379
        %388 = vst [vmem:[%s228 + $0x20] sm:$0xff] %v381
        %389 = vst [vmem:[%s228 + $0x28] sm:$0xff] %v383
        %s390 = smul.u32 %s27, 256
        %s391 = scvt.s32.f32 %s390
        %v392 = vlaneseq
        %v393 = vand.u32 %v392, 127
        %v394 = vadd.s32 %v393, 128
        %v395 = vcvt.s32.f32 %v393
        %v396 = vcvt.s32.f32 %v394
        %v397 = vstv %s391
        %v398 = vadd.f32 %v395, %v397
        %v399 = vadd.f32 %v396, %v397
        %v400 = vadd.f32 %v398, 0.5
        %v401 = vadd.f32 %v399, 0.5
        %v402 = vrcp.pop 16.0
        %v403 = vmul.f32 %v400, %v402
        %v404 = vmul.f32 %v401, %v402
        %v405 = vfloor.f32 %v403
        %v406 = vfloor.f32 %v404
        %v407 = vmul.f32 %v405, 16.0
        %v408 = vmul.f32 %v406, 16.0
        %v409 = vsub.f32 %v398, %v407
        %v410 = vsub.f32 %v399, %v408
        %v411 = vlaneseq
        %v412 = vshrl.u32 %v411, 7
        %vm413 = vcmp.eq.s32.totalorder %v412, 0
        %v414 = vsel %vm413, %v409, %v405
        %v415 = vsel %vm413, %v410, %v406
        %v416 = vmul.f32 %v373, 2.0
        %v417 = vmul.f32 %v375, 2.0
        %v418 = vsub.f32 %v416, 0.5
        %v419 = vsub.f32 %v417, 0.5
        %v420 = vadd.f32 %v418, %v414
        %v421 = vadd.f32 %v419, %v415
        %v422 = vmul.f32 %v420, 16.0
        %v423 = vmul.f32 %v421, 16.0
        %424 = vst [vmem:[%s228] sm:$0x3] %v422
        %425 = vst [vmem:[%s228 + $0x8] sm:$0x3] %v423
        %v426 = vsel %vm413, 10.0, 13.0
        %v427 = vmul.f32 %v416, %v416
        %v428 = vmul.f32 %v417, %v417
        %v430 = vrot.slane %v426, 6
        %v432 = vmul.f32 %v427, %v430
        %v433 = vmul.f32 %v428, %v430
        %434 = vst [vmem:[%s228] sm:$0xc] %v432
        %435 = vst [vmem:[%s228 + $0x8] sm:$0xc] %v433
        %v436 = vmul.f32 %v377, 2.0
        %v437 = vmul.f32 %v379, 2.0
        %v438 = vsub.f32 %v436, 0.5
        %v439 = vsub.f32 %v437, 0.5
        %v440 = vadd.f32 %v438, %v414
        %v441 = vadd.f32 %v439, %v415
        %v442 = vmul.f32 %v440, 16.0
        %v443 = vmul.f32 %v441, 16.0
        %444 = vst [vmem:[%s228 + $0x10] sm:$0x3] %v442
        %445 = vst [vmem:[%s228 + $0x18] sm:$0x3] %v443
        %v446 = vsel %vm413, 16.0, 30.0
        %v447 = vmul.f32 %v436, %v436
        %v448 = vmul.f32 %v437, %v437
        %v450 = vrot.slane %v446, 6
        %v452 = vmul.f32 %v447, %v450
        %v453 = vmul.f32 %v448, %v450
        %454 = vst [vmem:[%s228 + $0x10] sm:$0xc] %v452
        %455 = vst [vmem:[%s228 + $0x18] sm:$0xc] %v453
        %v456 = vmul.f32 %v381, 2.0
        %v457 = vmul.f32 %v383, 2.0
        %v458 = vsub.f32 %v456, 0.5
        %v459 = vsub.f32 %v457, 0.5
        %v460 = vadd.f32 %v458, %v414
        %v461 = vadd.f32 %v459, %v415
        %v462 = vmul.f32 %v460, 16.0
        %v463 = vmul.f32 %v461, 16.0
        %464 = vst [vmem:[%s228 + $0x20] sm:$0x3] %v462
        %465 = vst [vmem:[%s228 + $0x28] sm:$0x3] %v463
        %v466 = vsel %vm413, 33.0, 23.0
        %v467 = vmul.f32 %v456, %v456
        %v468 = vmul.f32 %v457, %v457
        %v470 = vrot.slane %v466, 6
        %v472 = vmul.f32 %v467, %v470
        %v473 = vmul.f32 %v468, %v470
        %474 = vst [vmem:[%s228 + $0x20] sm:$0xc] %v472
        %475 = vst [vmem:[%s228 + $0x28] sm:$0xc] %v473
        %s476 = sand.u32 %s114, 1
        %s477 = scalar_lea.sflag [#allocation3], %s476
        %s478 = sand.u32 %s114, 1
        %s479 = smul.addr %s478, 48
        %s480 = scalar_lea.vmem [#allocation2], %s479
        %s481 = sand.u32 %s142, 1
        %s482 = scalar_lea.sflag [#allocation5], %s481
        %s483 = sand.u32 %s142, 1
        %s484 = smul.addr %s483, 48
        %s485 = scalar_lea.vmem [#allocation4], %s484
        // Predicated region
        $region33: #{tpu_custom_call.1} parent=31 // pred_check
          %p486 = pneg %p124
        $region34: #{tpu_custom_call.1} parent=31 // pred_check_branch
          %488 = sbr.rel (%p486) target = $region36
        $region35: #{tpu_custom_call.1} parent=31 // pred_region
          %s489 = smul.u32 2, %s27
          %s491 = ssub.s32 768, 768
          %492 = vsyncadd %s477, %s491
          %s493 = smul.addr %s26, 6
          %s494 = sadd.s32 %s489, %s493
          %s495 = smul.addr %s494, 128
          %s496 = scalar_lea.hbm %s3, %s495
          %s497 = sshll.u32 %s480, 4
          %s498 = int_to_ptr.vmem [resolvable:$true] %s497
          %503 = dma.vmem_to_hbm [thread:$0]  %s498, 768, %s496, %s477, 256, 256, 16
        $region36: #{tpu_custom_call.1} parent=31 // pred_fallthru
          _
        // Predicated region
        $region37: #{tpu_custom_call.1} parent=31 // pred_check
          %p504 = pneg %p152
        $region38: #{tpu_custom_call.1} parent=31 // pred_check_branch
          %506 = sbr.rel (%p504) target = $region40
        $region39: #{tpu_custom_call.1} parent=31 // pred_region
          %s507 = smul.u32 2, %s27
          %s509 = ssub.s32 768, 768
          %510 = vsyncadd %s482, %s509
          %s511 = smul.addr %s26, 6
          %s512 = sadd.s32 %s507, %s511
          %s513 = smul.addr %s512, 128
          %s514 = scalar_lea.hbm %s4, %s513
          %s515 = sshll.u32 %s485, 4
          %s516 = int_to_ptr.vmem [resolvable:$true] %s515
          %521 = dma.vmem_to_hbm [thread:$0]  %s516, 768, %s514, %s482, 256, 256, 16
        $region40: #{tpu_custom_call.1} parent=31 // pred_fallthru
          _
      $region32: #{tpu_custom_call.1} parent=5 // pred_fallthru
        _
      %p522 = scmp.le.s32.totalorder 2, %s17
      // Predicated region
      $region41: #{tpu_custom_call.1} parent=5 // pred_check
        %p523 = pneg %p522
      $region42: #{tpu_custom_call.1} parent=5 // pred_check_branch
        %525 = sbr.rel (%p523) target = $region44
      $region43: #{tpu_custom_call.1} parent=5 // pred_region
        %s526 = ssub.s32 %s17, 2
        // Predicated region
        $region45: #{tpu_custom_call.1} parent=43 // pred_check
          %p527 = pneg %p130
        $region46: #{tpu_custom_call.1} parent=43 // pred_check_branch
          %529 = sbr.rel (%p527) target = $region48
        $region47: #{tpu_custom_call.1} parent=43 // pred_region
          %s530 = sand.u32 %s115, 1
          %s531 = scalar_lea.sflag [#allocation3], %s530
          %s532 = sand.u32 %s115, 1
          %s533 = smul.addr %s532, 48
          %s534 = scalar_lea.vmem [#allocation2], %s533
          %535 = dma.done %s531, 768
        $region48: #{tpu_custom_call.1} parent=43 // pred_fallthru
          _
        // Predicated region
        $region49: #{tpu_custom_call.1} parent=43 // pred_check
          %p536 = pneg %p158
        $region50: #{tpu_custom_call.1} parent=43 // pred_check_branch
          %538 = sbr.rel (%p536) target = $region52
        $region51: #{tpu_custom_call.1} parent=43 // pred_region
          %s539 = sand.u32 %s143, 1
          %s540 = scalar_lea.sflag [#allocation5], %s539
          %s541 = sand.u32 %s143, 1
          %s542 = smul.addr %s541, 48
          %s543 = scalar_lea.vmem [#allocation4], %s542
          %544 = dma.done %s540, 768
        $region52: #{tpu_custom_call.1} parent=43 // pred_fallthru
          _
      $region44: #{tpu_custom_call.1} parent=5 // pred_fallthru
        _
    $region6: #{tpu_custom_call.1} parent=1 // loop_footer
      %s21 = sadd.s32 1, %s17
    $region7: #{tpu_custom_call.1} parent=1 // loop_footer_branch
      %16 = sbr.rel target = $region3
    $region8: #{tpu_custom_call.1} parent=1 // loop_exit
      _
    %545 = vsyncpa [#allocation3], 1
    %s546 = scalar_lea.sflag [#allocation3], 1
    %547 = vsyncpa %s546, 1
    %548 = vsyncpa [#allocation5], 1
    %s549 = scalar_lea.sflag [#allocation5], 1
    %550 = vsyncpa %s549, 1

</llo_original>
